<compile_context>
chip_gen: v5e
topology: v5e:2x2
jax: 0.10.0
libtpu: 0.0.40
codegen_flags: <defaults>
</compile_context>

<pallas_src>
import jax
import jax.numpy as jnp
from jax.experimental import pallas as pl
from jax.experimental.pallas import tpu as pltpu

LN_EPS = 1e-5  # nn.LayerNorm default


def _layernorm_f32(x_ref):
    """Biased-variance LayerNorm over the last dim, all math in f32 (no affine)."""
    x = x_ref[...].astype(jnp.float32)
    mean = jnp.mean(x, axis=-1, keepdims=True)
    centered = x - mean
    var = jnp.mean(centered * centered, axis=-1, keepdims=True)
    return centered * jax.lax.rsqrt(var + LN_EPS)


def _sigmoid_exact(logits):
    # exp -> EUP slot; the divide is exact (no approximate reciprocal).
    return 1.0 / (1.0 + jnp.exp(-logits))


def predictor_kernel_o1(x_ref, w_ref, b_ref, o_ref):
    """O == 1 path: VPU multiply + XLU lane-reduce, no MXU.

    x_ref: (TB, D) VMEM   w_ref: (1, D) VMEM (gamma-folded weight row)
    b_ref: (1, 1) VMEM    o_ref: (TB, 1) VMEM
    """
    xn = _layernorm_f32(x_ref)                                   # (TB, D)
    w = w_ref[...].astype(jnp.float32)                           # (1, D)
    logits = jnp.sum(xn * w, axis=-1, keepdims=True)             # (TB, 1)
    logits = logits + b_ref[...].astype(jnp.float32)             # + (1, 1)
    o_ref[...] = _sigmoid_exact(logits).astype(o_ref.dtype)


def predictor_kernel_mxu(x_ref, w_ref, b_ref, o_ref):
    """Wide-output path: MXU matmul.

    x_ref: (TB, D)   w_ref: (D, O) gamma-folded   b_ref: (1, O)   o_ref: (TB, O)
    """
    xn = _layernorm_f32(x_ref)
    logits = jnp.dot(xn, w_ref[...].astype(jnp.float32),
                     preferred_element_type=jnp.float32)
    logits = logits + b_ref[...].astype(jnp.float32)
    o_ref[...] = _sigmoid_exact(logits).astype(o_ref.dtype)


def predictor_forward(x, gamma, beta, weight, bias, *, block_rows=512):
    """x: (B, D); gamma/beta: (D,); weight: (O, D) [torch layout]; bias: (O,)."""
    B, D = x.shape
    O = weight.shape[0]

    # ---- wrapper-side algebraic fold of LayerNorm affine into the Linear ----
    #   Linear(xn*gamma + beta) = xn @ (gamma[:,None] * W^T) + (beta @ W^T + b)
    w_t = weight.T.astype(jnp.float32)                                  # (D, O)
    w_fold = gamma.astype(jnp.float32)[:, None] * w_t                   # (D, O)
    b_fold = bias.astype(jnp.float32) + beta.astype(jnp.float32) @ w_t  # (O,)

    # ---- batch tiling: TB rows per grid step ----
    assert block_rows % 8 == 0
    TB = B if B <= block_rows else block_rows
    grid = (pl.cdiv(B, TB),)
    cparams = pltpu.CompilerParams(dimension_semantics=("parallel",))

    if O == 1:
        # Weight as a single lane-row (1, D); bias as a tiny (1, 1) VMEM block.
        w_row = w_fold.T                                       # (1, D)
        b_vmem = b_fold.reshape(1, 1)
        return pl.pallas_call(
            predictor_kernel_o1,
            out_shape=jax.ShapeDtypeStruct((B, O), x.dtype),
            grid=grid,
            in_specs=[
                pl.BlockSpec((TB, D), lambda i: (i, 0)),
                pl.BlockSpec((1, D), lambda i: (0, 0)),    # resident weight row
                pl.BlockSpec((1, 1), lambda i: (0, 0)),    # resident bias
            ],
            out_specs=pl.BlockSpec((TB, O), lambda i: (i, 0)),
            compiler_params=cparams,
        )(x, w_row, b_vmem)

    # General / wide-output path: MXU matmul with the weight kept resident
    # across the batch grid (same block index every step).
    # TODO(synk): for very large O/D, additionally tile O in 256-wide blocks
    # (128 on v5e) instead of one full (D, O) VMEM block.
    return pl.pallas_call(
        predictor_kernel_mxu,
        out_shape=jax.ShapeDtypeStruct((B, O), x.dtype),
        grid=grid,
        in_specs=[
            pl.BlockSpec((TB, D), lambda i: (i, 0)),
            pl.BlockSpec((D, O), lambda i: (0, 0)),
            pl.BlockSpec((1, O), lambda i: (0, 0)),
        ],
        out_specs=pl.BlockSpec((TB, O), lambda i: (i, 0)),
        compiler_params=cparams,
    )(x, w_fold, b_fold.reshape(1, O))


if __name__ == "__main__":
    # Small shapes consistent with the module: batch=8, input_dim=32, output_dim=1.
    B, D, O = 8, 32, 1

    key = jax.random.PRNGKey(0)
    kx, kw, kb, kg, kbe = jax.random.split(key, 5)

    x = jax.random.normal(kx, (B, D), dtype=jnp.float32)

    # nn.Linear-like uniform init; non-trivial LN affine so the fold is exercised.
    bound = 1.0 / (D ** 0.5)
    weight = jax.random.uniform(kw, (O, D), minval=-bound, maxval=bound,
                                dtype=jnp.float32)
    bias = jax.random.uniform(kb, (O,), minval=-bound, maxval=bound,
                              dtype=jnp.float32)
    gamma = 1.0 + 0.1 * jax.random.normal(kg, (D,), dtype=jnp.float32)
    beta = 0.1 * jax.random.normal(kbe, (D,), dtype=jnp.float32)

    y = predictor_forward(x, gamma, beta, weight, bias)
    jax.block_until_ready(y)

    # Reference check in plain JAX (same math as the PyTorch module).
    mean = jnp.mean(x, axis=-1, keepdims=True)
    var = jnp.mean((x - mean) ** 2, axis=-1, keepdims=True)
    emb = (x - mean) / jnp.sqrt(var + LN_EPS) * gamma + beta
    ref = jax.nn.sigmoid(emb @ weight.T + bias)

    # All kernel math is exact f32 now (no approximate reciprocal), so only
    # rounding / reassociation differences remain.
    assert jnp.allclose(y, ref, atol=1e-4, rtol=1e-4), "mismatch vs reference"

    print("KERNEL_OK")
</pallas_src>

<mosaic_0001>
module attributes {stable_mosaic.version = 11 : i64} {
  func.func @predictor_kernel_o1(%arg0: i32, %arg1: memref<8x32xf32, #tpu.memory_space<vmem>>, %arg2: memref<1x32xf32, #tpu.memory_space<vmem>>, %arg3: memref<1x1xf32, #tpu.memory_space<vmem>>, %arg4: memref<8x1xf32, #tpu.memory_space<vmem>>) attributes {dimension_semantics = [#tpu.dimension_semantics<parallel>], iteration_bounds = array<i64: 1>, scalar_prefetch = 0 : i64, scratch_operands = 0 : i64, tpu.core_type = #tpu.core_type<tc>, window_params = [{transform_indices = @transform_0, window_bounds = array<i64: 8, 32>}, {pipeline_mode = #tpu.pipeline_mode<synchronous>, transform_indices = @transform_1, window_bounds = array<i64: 1, 32>}, {pipeline_mode = #tpu.pipeline_mode<synchronous>, transform_indices = @transform_2, window_bounds = array<i64: 1, 1>}, {transform_indices = @transform_3, window_bounds = array<i64: 8, 1>}]} {
    %c0 = arith.constant 0 : index
    %c0_0 = arith.constant 0 : index
    %0 = vector.load %arg1[%c0, %c0_0] : memref<8x32xf32, #tpu.memory_space<vmem>>, vector<8x32xf32>
    %cst = arith.constant dense<0.000000e+00> : vector<8xf32>
    %1 = vector.multi_reduction <add>, %0, %cst [1] : vector<8x32xf32> to vector<8xf32>
    %2 = vector.shape_cast %1 : vector<8xf32> to vector<8x1xf32>
    %cst_1 = arith.constant 3.200000e+01 : f32
    %3 = vector.broadcast %cst_1 : f32 to vector<8x1xf32>
    %4 = arith.divf %2, %3 : vector<8x1xf32>
    %5 = vector.broadcast %4 : vector<8x1xf32> to vector<8x32xf32>
    %6 = arith.subf %0, %5 : vector<8x32xf32>
    %7 = arith.mulf %6, %6 : vector<8x32xf32>
    %cst_2 = arith.constant dense<0.000000e+00> : vector<8xf32>
    %8 = vector.multi_reduction <add>, %7, %cst_2 [1] : vector<8x32xf32> to vector<8xf32>
    %9 = vector.shape_cast %8 : vector<8xf32> to vector<8x1xf32>
    %cst_3 = arith.constant 3.200000e+01 : f32
    %10 = vector.broadcast %cst_3 : f32 to vector<8x1xf32>
    %11 = arith.divf %9, %10 : vector<8x1xf32>
    %cst_4 = arith.constant 9.99999974E-6 : f32
    %12 = vector.broadcast %cst_4 : f32 to vector<8x1xf32>
    %13 = arith.addf %11, %12 : vector<8x1xf32>
    %14 = math.rsqrt %13 : vector<8x1xf32>
    %15 = vector.broadcast %14 : vector<8x1xf32> to vector<8x32xf32>
    %16 = arith.mulf %6, %15 : vector<8x32xf32>
    %c0_5 = arith.constant 0 : index
    %c0_6 = arith.constant 0 : index
    %17 = vector.load %arg2[%c0_5, %c0_6] : memref<1x32xf32, #tpu.memory_space<vmem>>, vector<1x32xf32>
    %18 = vector.broadcast %17 : vector<1x32xf32> to vector<8x32xf32>
    %19 = arith.mulf %16, %18 : vector<8x32xf32>
    %cst_7 = arith.constant dense<0.000000e+00> : vector<8xf32>
    %20 = vector.multi_reduction <add>, %19, %cst_7 [1] : vector<8x32xf32> to vector<8xf32>
    %21 = vector.shape_cast %20 : vector<8xf32> to vector<8x1xf32>
    %c0_8 = arith.constant 0 : index
    %c0_9 = arith.constant 0 : index
    %22 = vector.load %arg3[%c0_8, %c0_9] : memref<1x1xf32, #tpu.memory_space<vmem>>, vector<1x1xf32>
    %23 = vector.broadcast %22 : vector<1x1xf32> to vector<8x1xf32>
    %24 = arith.addf %21, %23 : vector<8x1xf32>
    %cst_10 = arith.constant 0.000000e+00 : f32
    %25 = vector.broadcast %cst_10 : f32 to vector<8x1xf32>
    %26 = arith.subf %25, %24 : vector<8x1xf32>
    %27 = math.exp %26 : vector<8x1xf32>
    %cst_11 = arith.constant 1.000000e+00 : f32
    %28 = vector.broadcast %cst_11 : f32 to vector<8x1xf32>
    %29 = arith.addf %28, %27 : vector<8x1xf32>
    %cst_12 = arith.constant 1.000000e+00 : f32
    %30 = vector.broadcast %cst_12 : f32 to vector<8x1xf32>
    %31 = arith.divf %30, %29 : vector<8x1xf32>
    %c0_13 = arith.constant 0 : index
    %c0_14 = arith.constant 0 : index
    %32 = vector.load %arg4[%c0_13, %c0_14] : memref<8x1xf32, #tpu.memory_space<vmem>>, vector<8x1xf32>
    tpu.vector_store %arg4[%c0_13, %c0_14], %31 {strides = array<i32>} : memref<8x1xf32, #tpu.memory_space<vmem>>, vector<8x1xf32>,
    return
  }
  func.func @transform_0(%arg0: i32) -> (i32, i32) {
    %c0_i32 = arith.constant 0 : i32
    %c0_i32_0 = arith.constant 0 : i32
    return %arg0, %c0_i32 : i32, i32
  }
  func.func @transform_1(%arg0: i32) -> (i32, i32) {
    %c0_i32 = arith.constant 0 : i32
    %c0_i32_0 = arith.constant 0 : i32
    %c0_i32_1 = arith.constant 0 : i32
    return %c0_i32, %c0_i32_0 : i32, i32
  }
  func.func @transform_2(%arg0: i32) -> (i32, i32) {
    %c0_i32 = arith.constant 0 : i32
    %c0_i32_0 = arith.constant 0 : i32
    %c0_i32_1 = arith.constant 0 : i32
    return %c0_i32, %c0_i32_0 : i32, i32
  }
  func.func @transform_3(%arg0: i32) -> (i32, i32) {
    %c0_i32 = arith.constant 0 : i32
    %c0_i32_0 = arith.constant 0 : i32
    return %arg0, %c0_i32 : i32, i32
  }
}

</mosaic_0001>

<llo_original>
// kernel: tpu_custom_call.1
$region0: #{tpu_custom_call.1}
  #allocation0 [shape = 'u32[]', space=smem, size = 0x4, offset = 0x4, fixed_abs, tag = 'smem constant byte address 0x4 - core index']
  #allocation1 [shape = 'u32[72,128]{1,0:T(1,128)}', space=vmem, size = 0x9000, scoped, tag = 'internal scratch']
  #allocation2 [shape = 'f32[1,1]{1,0:T(1,128)S(1)}', space=vmem, size = 0x200, scoped, tag = 'scoped memory for tpu_custom_call.1']
  %s0 = inlined_call_operand.hbm [shape: f32[8,32], index: 0, kind: input, shape index: {}]
  %s1 = inlined_call_operand.vmem [shape: f32[1,32], index: 1, kind: input, shape index: {}]
  %s2 = inlined_call_operand.<no memory space> [shape: f32[1,1], index: 2, kind: input, shape index: {}]
  %s3 = inlined_call_operand.vmem [shape: f32[8,1], index: 3, kind: output, shape index: {}]
  %s4 = sld [smem:[#allocation0]]
  $region26: #{tpu_custom_call.1} parent=0
    _
  %s6 = ssub.s32 1, %s4
  %s7 = scalar_select 0, %s6, %s4
  %v8 = vstv %s2
  %9 = vst [vmem:[#allocation2] sm:$0x1] %v8
  $region1: #{tpu_custom_call.1} parent=0
    #allocation3 [shape = 'u8[4096]{0}', space=vmem, size = 0x1000, scoped, tag = 'input window, operand 0, single buffered']
    #allocation4 [shape = 's32[1]{0}', space=sflag, size = 0x4, scoped, tag = 'scoped memory for tpu_custom_call.1']
    %10 = vsyncpa [#allocation4], 0
    // Predicated region
    $region2: #{tpu_custom_call.1} parent=1 // pred_check
      _
    $region3: #{tpu_custom_call.1} parent=1 // pred_check_branch
      %12 = sbr.rel (0) target = $region5
    $region4: #{tpu_custom_call.1} parent=1 // pred_region
      %14 = vsyncadd [#allocation4], 0
      %s16 = sshll.u32 %s0, 4
      %s17 = int_to_ptr.hbm [resolvable:$true] %s16
      %s18 = sshll.u32 [#allocation3], 4
      %s19 = int_to_ptr.vmem [resolvable:$true] %s18
      %21 = dma.hbm_to_vmem [thread:$0]  %s17, 128, %s19, [#allocation4]
    $region5: #{tpu_custom_call.1} parent=1 // pred_fallthru
      _
    // Predicated region
    $region6: #{tpu_custom_call.1} parent=1 // pred_check
      _
    $region7: #{tpu_custom_call.1} parent=1 // pred_check_branch
      %23 = sbr.rel (0) target = $region9
    $region8: #{tpu_custom_call.1} parent=1 // pred_region
      _
    $region9: #{tpu_custom_call.1} parent=1 // pred_fallthru
      _
    // Predicated region
    $region10: #{tpu_custom_call.1} parent=1 // pred_check
      _
    $region11: #{tpu_custom_call.1} parent=1 // pred_check_branch
      %25 = sbr.rel (0) target = $region13
    $region12: #{tpu_custom_call.1} parent=1 // pred_region
      _
    $region13: #{tpu_custom_call.1} parent=1 // pred_fallthru
      _
    // Predicated region
    $region14: #{tpu_custom_call.1} parent=1 // pred_check
      _
    $region15: #{tpu_custom_call.1} parent=1 // pred_check_branch
      %27 = sbr.rel (0) target = $region17
    $region16: #{tpu_custom_call.1} parent=1 // pred_region
      %29 = dma.done [#allocation4], 128
    $region17: #{tpu_custom_call.1} parent=1 // pred_fallthru
      _
    %v30 = vld [vmem:[#allocation3] sm:$0xff]
    %vm31 = vcmask 261120
    %v32 = vsel %vm31, %v30, 0.0
    %33 = vadd.xlane.f32.xlu0 %v32
    %v34 = vpop.xlane.xlu0 %33
    %v35 = vrcp.pop 32.0
    %v36 = vmul.f32 32.0, %v35
    %v37 = vsub.f32 1.0, %v36
    %v38 = vmul.f32 %v35, %v37
    %v39 = vadd.f32 %v35, %v38
    %vm40 = vweird.f32 %v35
    %v41 = vsel %vm40, %v35, %v39
    %v42 = vmul.f32 %v34, %v41
    %v43 = vsub.f32 %v30, %v42
    %v44 = vmul.f32 %v43, %v43
    %v45 = vsel %vm31, %v44, 0.0
    %46 = vadd.xlane.f32.xlu0 %v45
    %v47 = vpop.xlane.xlu0 %46
    %v48 = vmul.f32 %v47, %v41
    %v49 = vadd.f32 %v48, 1e-05
    %v50 = vrsqrt.pop %v49
    %v51 = vmul.f32 %v50, %v49
    %v52 = vmul.f32 %v51, %v50
    %v53 = vmul.f32 0.5, %v52
    %v54 = vsub.f32 1.5, %v53
    %v55 = vmul.f32 %v50, %v54
    %vm56 = vweird.f32 %v49
    %vm57 = vweird.f32 %v50
    %vm58 = vmor %vm56, %vm57
    %v59 = vsel %vm58, %v50, %v55
    %v60 = vmul.f32 %v43, %v59
    %v61 = vld [vmem:[%s1] sm:$0x1]
    %v63 = vperm.slane %v61, 0
    %v65 = vmul.f32 %v60, %v63
    %v66 = vsel %vm31, %v65, 0.0
    %67 = vadd.xlane.f32.xlu0 %v66
    %v68 = vpop.xlane.xlu0 %67
    %v69 = vld [vmem:[#allocation2] sm:$0x1]
    %v71 = vperm.slane %v69, 0
    %v73 = vadd.f32 %v68, %v71
    %v74 = vsub.f32 0.0, %v73
    %v75 = vmul.f32 %v74, 1.442695
    %v76 = vpow.pop %v75
    %v77 = vadd.f32 %v76, 1.0
    %v78 = vrcp.pop %v77
    %v79 = vmul.f32 %v77, %v78
    %v80 = vsub.f32 1.0, %v79
    %v81 = vmul.f32 %v78, %v80
    %v82 = vadd.f32 %v78, %v81
    %vm83 = vweird.f32 %v77
    %vm84 = vweird.f32 %v78
    %vm85 = vmor %vm83, %vm84
    %v86 = vsel %vm85, %v78, %v82
    %v87 = vand.u32 2147483647, %v77
    %vm88 = vcmp.eq.f32.partialorder %v87, 8.507059e+37
    %v89 = vand.u32 %v77, 2147483648
    %v90 = vor.u32 1.1754944e-38, %v89
    %v91 = vsel %vm88, %v90, %v86
    %v92 = vmul.f32 1.0, %v91
    %vm93 = vcmask 7168
    %94 = vst.msk [vmem:[%s3] sm:$0xff] %vm93, %v92
    // Predicated region
    $region18: #{tpu_custom_call.1} parent=1 // pred_check
      _
    $region19: #{tpu_custom_call.1} parent=1 // pred_check_branch
      %96 = sbr.rel (0) target = $region21
    $region20: #{tpu_custom_call.1} parent=1 // pred_region
      _
    $region21: #{tpu_custom_call.1} parent=1 // pred_fallthru
      _
    // Predicated region
    $region22: #{tpu_custom_call.1} parent=1 // pred_check
      _
    $region23: #{tpu_custom_call.1} parent=1 // pred_check_branch
      %98 = sbr.rel (0) target = $region25
    $region24: #{tpu_custom_call.1} parent=1 // pred_region
      _
    $region25: #{tpu_custom_call.1} parent=1 // pred_fallthru
      _
    %99 = vsyncpa [#allocation4], 1

</llo_original>
